<compile_context>
chip_gen: v5e
topology: v5e:2x2
jax: 0.10.0
libtpu: 0.0.40
codegen_flags: <defaults>
</compile_context>

<pallas_src>
import jax
import jax.numpy as jnp
from jax.experimental import pallas as pl
from jax.experimental.pallas import tpu as pltpu


OUT_DIM = 9      # final logits width (unpadded, written directly)
L3_PAD = 32      # layer-3 hidden width zero-padded 30 -> 32 (lane-aligned)
H1, H2 = 128, 64


def _round_up(n, m):
    return ((n + m - 1) // m) * m


def _vmem_limit_bytes():
    """Generation-aware scoped-VMEM limit (safe fallback = v7x's 64 MiB)."""
    try:
        phys = pltpu.get_tpu_info().vmem_capacity_bytes
    except Exception:
        phys = 64 << 20
    # Leave headroom for weights, pipeline bookkeeping and compiler scratch.
    return min((phys * 3) // 4, 96 << 20)


def mlp_kernel(x_ref,
               w1_ref, b1_ref,
               w2_ref, b2_ref,
               w3_ref, b3_ref,
               w4_ref, b4_ref,
               o_ref):
    """Full 4-layer MLP forward for one batch tile, entirely in VMEM.

    x arrives f32 and is cast to bf16 in-kernel (free on the VPU; the kernel
    is HBM-bound). Matmul operands are bf16 (MXU-native); accumulation, bias
    add and ReLU are f32. Output is the unpadded 9-wide f32 logits.
    """
    x = x_ref[...].astype(jnp.bfloat16)              # (Bt, D) bf16

    # Layer 1: (Bt, D) @ (D, 128) + (1, 128) -> ReLU
    h = jnp.dot(x, w1_ref[...], preferred_element_type=jnp.float32)
    h = jnp.maximum(h + b1_ref[...], 0.0)
    # TODO(synk): Dropout(p=0.3) is identity in eval mode; training-mode
    # masking would use pltpu.prng_seed / pltpu.prng_random_bits.

    # Layer 2: (Bt, 128) @ (128, 64) + (1, 64) -> ReLU
    h = jnp.dot(h.astype(jnp.bfloat16), w2_ref[...],
                preferred_element_type=jnp.float32)
    h = jnp.maximum(h + b2_ref[...], 0.0)

    # Layer 3 (zero-padded to 32 cols): (Bt, 64) @ (64, 32) + (1, 32) -> ReLU
    h = jnp.dot(h.astype(jnp.bfloat16), w3_ref[...],
                preferred_element_type=jnp.float32)
    h = jnp.maximum(h + b3_ref[...], 0.0)

    # Layer 4 (logits): (Bt, 32) @ (32, 9) + (1, 9)
    out = jnp.dot(h.astype(jnp.bfloat16), w4_ref[...],
                  preferred_element_type=jnp.float32) + b4_ref[...]
    o_ref[...] = out.astype(o_ref.dtype)


def prepare_params(params):
    """One-time parameter prep (cast to bf16, lane-align layer 3/4).

    Keeps the per-call graph to just the pallas_call; zero-padding layer 3's
    output columns (and w4's K rows) is numerically identical.
    """
    w3p = jnp.pad(params["w3"], ((0, 0), (0, L3_PAD - params["w3"].shape[1])))
    b3p = jnp.pad(params["b3"], ((0, 0), (0, L3_PAD - params["b3"].shape[1])))
    w4p = jnp.pad(params["w4"], ((0, L3_PAD - params["w4"].shape[0]), (0, 0)))
    return {
        "w1": params["w1"].astype(jnp.bfloat16), "b1": params["b1"],
        "w2": params["w2"].astype(jnp.bfloat16), "b2": params["b2"],
        "w3": w3p.astype(jnp.bfloat16),          "b3": b3p,
        "w4": w4p.astype(jnp.bfloat16),          "b4": params["b4"],
    }


def _choose_batch_tile(B, D, batch_tile, vmem_limit):
    """Pick the batch tile: big (amortize ~0.35us/step), VMEM-capped,
    multiple of 8, and split so v7x's two TensorCores both get work."""
    bt = min(batch_tile, _round_up(B, 8))
    bt = max(_round_up(bt, 8), 8)

    # VMEM cap: x tile + all f32 intermediates + out tile, x2 for
    # double-buffering / slack; weights are tiny and covered by the margin.
    bytes_per_row = 4 * (D + H1 + H2 + L3_PAD + OUT_DIM)
    max_rows = (vmem_limit // 2) // (2 * bytes_per_row)
    max_rows = max((max_rows // 8) * 8, 8)
    bt = min(bt, max_rows)

    # v7x megacore: make sure moderate batches produce >= 2 grid steps so the
    # "parallel" axis shards across both TensorCores.
    if B >= 256 and pl.cdiv(B, bt) == 1:
        bt = max(8, _round_up(pl.cdiv(B, 2), 8))

    # TODO(synk): for very large input_dim (>~4096) also tile the K dim of
    # layer 1 with a second "arbitrary" grid axis + f32 accumulator.
    return bt


def my_classifier_forward(x, prepped, *, batch_tile=1024):
    """Runs the MLP with a 1-D grid over batch tiles.

    x: (B, input_dim) float32
    prepped: output of prepare_params().
    Returns (B, 9) float32 logits.
    """
    B, D = x.shape
    vmem_limit = _vmem_limit_bytes()
    bt = _choose_batch_tile(B, D, batch_tile, vmem_limit)
    grid = (pl.cdiv(B, bt),)   # partial last tile handled/masked by Pallas

    def full_spec(arr):
        return pl.BlockSpec(arr.shape, lambda i: (0,) * arr.ndim)

    # TODO(synk): if profiling on v7x shows exposed DMA for tiny D, add
    # pipeline_mode=pl.Buffered(3) on the x BlockSpec.
    return pl.pallas_call(
        mlp_kernel,
        out_shape=jax.ShapeDtypeStruct((B, OUT_DIM), jnp.float32),
        grid_spec=pltpu.PrefetchScalarGridSpec(
            num_scalar_prefetch=0,
            grid=grid,
            in_specs=[
                pl.BlockSpec((bt, D), lambda i: (i, 0)),
                full_spec(prepped["w1"]), full_spec(prepped["b1"]),
                full_spec(prepped["w2"]), full_spec(prepped["b2"]),
                full_spec(prepped["w3"]), full_spec(prepped["b3"]),
                full_spec(prepped["w4"]), full_spec(prepped["b4"]),
            ],
            out_specs=pl.BlockSpec((bt, OUT_DIM), lambda i: (i, 0)),
        ),
        compiler_params=pltpu.CompilerParams(
            dimension_semantics=("parallel",),
            vmem_limit_bytes=vmem_limit),
    )(x,
      prepped["w1"], prepped["b1"],
      prepped["w2"], prepped["b2"],
      prepped["w3"], prepped["b3"],
      prepped["w4"], prepped["b4"])


def init_params(key, input_dim):
    """Deterministic parameter init matching the nn.Linear shapes."""
    dims = [(input_dim, 128), (128, 64), (64, 30), (30, OUT_DIM)]
    params = {}
    for idx, (fan_in, fan_out) in enumerate(dims, start=1):
        key, kw, kb = jax.random.split(key, 3)
        bound = 1.0 / jnp.sqrt(jnp.float32(fan_in))
        # stored as (in, out) so the kernel computes x @ W
        params[f"w{idx}"] = jax.random.uniform(
            kw, (fan_in, fan_out), jnp.float32, -bound, bound)
        params[f"b{idx}"] = jax.random.uniform(
            kb, (1, fan_out), jnp.float32, -bound, bound)
    return params


def reference_forward(x, params):
    h = x
    for idx in range(1, 5):
        h = h @ params[f"w{idx}"] + params[f"b{idx}"]
        if idx < 4:
            h = jnp.maximum(h, 0.0)
    return h


if __name__ == "__main__":
    key = jax.random.PRNGKey(0)
    k_x, k_p = jax.random.split(key)

    batch, input_dim = 8, 32
    x = jax.random.normal(k_x, (batch, input_dim), dtype=jnp.float32)
    params = init_params(k_p, input_dim)
    prepped = prepare_params(params)

    out = my_classifier_forward(x, prepped)
    out = jax.block_until_ready(out)

    ref = reference_forward(x, params)
    assert out.shape == (batch, OUT_DIM), out.shape
    # bf16 matmul operands (f32 accumulation) -> loosened tolerance vs the
    # pure-f32 reference.
    assert jnp.allclose(out, ref, atol=5e-2, rtol=5e-2), "mismatch vs reference"

    print("KERNEL_OK")
</pallas_src>

<mosaic_0001>
module attributes {stable_mosaic.version = 11 : i64} {
  func.func @mlp_kernel(%arg0: i32, %arg1: memref<8x32xf32, #tpu.memory_space<vmem>>, %arg2: memref<32x128xbf16, #tpu.memory_space<vmem>>, %arg3: memref<1x128xf32, #tpu.memory_space<vmem>>, %arg4: memref<128x64xbf16, #tpu.memory_space<vmem>>, %arg5: memref<1x64xf32, #tpu.memory_space<vmem>>, %arg6: memref<64x32xbf16, #tpu.memory_space<vmem>>, %arg7: memref<1x32xf32, #tpu.memory_space<vmem>>, %arg8: memref<32x9xbf16, #tpu.memory_space<vmem>>, %arg9: memref<1x9xf32, #tpu.memory_space<vmem>>, %arg10: memref<8x9xf32, #tpu.memory_space<vmem>>) attributes {dimension_semantics = [#tpu.dimension_semantics<parallel>], iteration_bounds = array<i64: 1>, scalar_prefetch = 0 : i64, scratch_operands = 0 : i64, tpu.core_type = #tpu.core_type<tc>, window_params = [{transform_indices = @transform_0, window_bounds = array<i64: 8, 32>}, {pipeline_mode = #tpu.pipeline_mode<synchronous>, transform_indices = @transform_1, window_bounds = array<i64: 32, 128>}, {pipeline_mode = #tpu.pipeline_mode<synchronous>, transform_indices = @transform_2, window_bounds = array<i64: 1, 128>}, {pipeline_mode = #tpu.pipeline_mode<synchronous>, transform_indices = @transform_3, window_bounds = array<i64: 128, 64>}, {pipeline_mode = #tpu.pipeline_mode<synchronous>, transform_indices = @transform_4, window_bounds = array<i64: 1, 64>}, {pipeline_mode = #tpu.pipeline_mode<synchronous>, transform_indices = @transform_5, window_bounds = array<i64: 64, 32>}, {pipeline_mode = #tpu.pipeline_mode<synchronous>, transform_indices = @transform_6, window_bounds = array<i64: 1, 32>}, {pipeline_mode = #tpu.pipeline_mode<synchronous>, transform_indices = @transform_7, window_bounds = array<i64: 32, 9>}, {pipeline_mode = #tpu.pipeline_mode<synchronous>, transform_indices = @transform_8, window_bounds = array<i64: 1, 9>}, {transform_indices = @transform_9, window_bounds = array<i64: 8, 9>}]} {
    %c0 = arith.constant 0 : index
    %c0_0 = arith.constant 0 : index
    %0 = vector.load %arg1[%c0, %c0_0] : memref<8x32xf32, #tpu.memory_space<vmem>>, vector<8x32xf32>
    %1 = arith.truncf %0 : vector<8x32xf32> to vector<8x32xbf16>
    %c0_1 = arith.constant 0 : index
    %c0_2 = arith.constant 0 : index
    %2 = vector.load %arg2[%c0_1, %c0_2] : memref<32x128xbf16, #tpu.memory_space<vmem>>, vector<32x128xbf16>
    %cst = arith.constant dense<0.000000e+00> : vector<8x128xf32>
    %3 = tpu.matmul %1, %2, %cst {dimension_numbers = #tpu.dot_dimension_numbers<[1], [0], [0], [1], [0, 0, 1, 1], [], []>} : vector<8x32xbf16>, vector<32x128xbf16>, vector<8x128xf32> -> vector<8x128xf32>
    %c0_3 = arith.constant 0 : index
    %c0_4 = arith.constant 0 : index
    %4 = vector.load %arg3[%c0_3, %c0_4] : memref<1x128xf32, #tpu.memory_space<vmem>>, vector<1x128xf32>
    %5 = vector.broadcast %4 : vector<1x128xf32> to vector<8x128xf32>
    %6 = arith.addf %3, %5 : vector<8x128xf32>
    %cst_5 = arith.constant 0.000000e+00 : f32
    %7 = vector.broadcast %cst_5 : f32 to vector<8x128xf32>
    %8 = arith.maximumf %6, %7 : vector<8x128xf32>
    %9 = arith.truncf %8 : vector<8x128xf32> to vector<8x128xbf16>
    %c0_6 = arith.constant 0 : index
    %c0_7 = arith.constant 0 : index
    %10 = vector.load %arg4[%c0_6, %c0_7] : memref<128x64xbf16, #tpu.memory_space<vmem>>, vector<128x64xbf16>
    %cst_8 = arith.constant dense<0.000000e+00> : vector<8x64xf32>
    %11 = tpu.matmul %9, %10, %cst_8 {dimension_numbers = #tpu.dot_dimension_numbers<[1], [0], [0], [1], [0, 0, 1, 1], [], []>} : vector<8x128xbf16>, vector<128x64xbf16>, vector<8x64xf32> -> vector<8x64xf32>
    %c0_9 = arith.constant 0 : index
    %c0_10 = arith.constant 0 : index
    %12 = vector.load %arg5[%c0_9, %c0_10] : memref<1x64xf32, #tpu.memory_space<vmem>>, vector<1x64xf32>
    %13 = vector.broadcast %12 : vector<1x64xf32> to vector<8x64xf32>
    %14 = arith.addf %11, %13 : vector<8x64xf32>
    %cst_11 = arith.constant 0.000000e+00 : f32
    %15 = vector.broadcast %cst_11 : f32 to vector<8x64xf32>
    %16 = arith.maximumf %14, %15 : vector<8x64xf32>
    %17 = arith.truncf %16 : vector<8x64xf32> to vector<8x64xbf16>
    %c0_12 = arith.constant 0 : index
    %c0_13 = arith.constant 0 : index
    %18 = vector.load %arg6[%c0_12, %c0_13] : memref<64x32xbf16, #tpu.memory_space<vmem>>, vector<64x32xbf16>
    %cst_14 = arith.constant dense<0.000000e+00> : vector<8x32xf32>
    %19 = tpu.matmul %17, %18, %cst_14 {dimension_numbers = #tpu.dot_dimension_numbers<[1], [0], [0], [1], [0, 0, 1, 1], [], []>} : vector<8x64xbf16>, vector<64x32xbf16>, vector<8x32xf32> -> vector<8x32xf32>
    %c0_15 = arith.constant 0 : index
    %c0_16 = arith.constant 0 : index
    %20 = vector.load %arg7[%c0_15, %c0_16] : memref<1x32xf32, #tpu.memory_space<vmem>>, vector<1x32xf32>
    %21 = vector.broadcast %20 : vector<1x32xf32> to vector<8x32xf32>
    %22 = arith.addf %19, %21 : vector<8x32xf32>
    %cst_17 = arith.constant 0.000000e+00 : f32
    %23 = vector.broadcast %cst_17 : f32 to vector<8x32xf32>
    %24 = arith.maximumf %22, %23 : vector<8x32xf32>
    %25 = arith.truncf %24 : vector<8x32xf32> to vector<8x32xbf16>
    %c0_18 = arith.constant 0 : index
    %c0_19 = arith.constant 0 : index
    %26 = vector.load %arg8[%c0_18, %c0_19] : memref<32x9xbf16, #tpu.memory_space<vmem>>, vector<32x9xbf16>
    %cst_20 = arith.constant dense<0.000000e+00> : vector<8x9xf32>
    %27 = tpu.matmul %25, %26, %cst_20 {dimension_numbers = #tpu.dot_dimension_numbers<[1], [0], [0], [1], [0, 0, 1, 1], [], []>} : vector<8x32xbf16>, vector<32x9xbf16>, vector<8x9xf32> -> vector<8x9xf32>
    %c0_21 = arith.constant 0 : index
    %c0_22 = arith.constant 0 : index
    %28 = vector.load %arg9[%c0_21, %c0_22] : memref<1x9xf32, #tpu.memory_space<vmem>>, vector<1x9xf32>
    %29 = vector.broadcast %28 : vector<1x9xf32> to vector<8x9xf32>
    %30 = arith.addf %27, %29 : vector<8x9xf32>
    %c0_23 = arith.constant 0 : index
    %c0_24 = arith.constant 0 : index
    %31 = vector.load %arg10[%c0_23, %c0_24] : memref<8x9xf32, #tpu.memory_space<vmem>>, vector<8x9xf32>
    tpu.vector_store %arg10[%c0_23, %c0_24], %30 {strides = array<i32>} : memref<8x9xf32, #tpu.memory_space<vmem>>, vector<8x9xf32>,
    return
  }
  func.func @transform_0(%arg0: i32) -> (i32, i32) {
    %c0_i32 = arith.constant 0 : i32
    %c0_i32_0 = arith.constant 0 : i32
    return %arg0, %c0_i32 : i32, i32
  }
  func.func @transform_1(%arg0: i32) -> (i32, i32) {
    %c0_i32 = arith.constant 0 : i32
    %c0_i32_0 = arith.constant 0 : i32
    %c0_i32_1 = arith.constant 0 : i32
    return %c0_i32, %c0_i32_0 : i32, i32
  }
  func.func @transform_2(%arg0: i32) -> (i32, i32) {
    %c0_i32 = arith.constant 0 : i32
    %c0_i32_0 = arith.constant 0 : i32
    %c0_i32_1 = arith.constant 0 : i32
    return %c0_i32, %c0_i32_0 : i32, i32
  }
  func.func @transform_3(%arg0: i32) -> (i32, i32) {
    %c0_i32 = arith.constant 0 : i32
    %c0_i32_0 = arith.constant 0 : i32
    %c0_i32_1 = arith.constant 0 : i32
    return %c0_i32, %c0_i32_0 : i32, i32
  }
  func.func @transform_4(%arg0: i32) -> (i32, i32) {
    %c0_i32 = arith.constant 0 : i32
    %c0_i32_0 = arith.constant 0 : i32
    %c0_i32_1 = arith.constant 0 : i32
    return %c0_i32, %c0_i32_0 : i32, i32
  }
  func.func @transform_5(%arg0: i32) -> (i32, i32) {
    %c0_i32 = arith.constant 0 : i32
    %c0_i32_0 = arith.constant 0 : i32
    %c0_i32_1 = arith.constant 0 : i32
    return %c0_i32, %c0_i32_0 : i32, i32
  }
  func.func @transform_6(%arg0: i32) -> (i32, i32) {
    %c0_i32 = arith.constant 0 : i32
    %c0_i32_0 = arith.constant 0 : i32
    %c0_i32_1 = arith.constant 0 : i32
    return %c0_i32, %c0_i32_0 : i32, i32
  }
  func.func @transform_7(%arg0: i32) -> (i32, i32) {
    %c0_i32 = arith.constant 0 : i32
    %c0_i32_0 = arith.constant 0 : i32
    %c0_i32_1 = arith.constant 0 : i32
    return %c0_i32, %c0_i32_0 : i32, i32
  }
  func.func @transform_8(%arg0: i32) -> (i32, i32) {
    %c0_i32 = arith.constant 0 : i32
    %c0_i32_0 = arith.constant 0 : i32
    %c0_i32_1 = arith.constant 0 : i32
    return %c0_i32, %c0_i32_0 : i32, i32
  }
  func.func @transform_9(%arg0: i32) -> (i32, i32) {
    %c0_i32 = arith.constant 0 : i32
    %c0_i32_0 = arith.constant 0 : i32
    return %arg0, %c0_i32 : i32, i32
  }
}

</mosaic_0001>

<llo_original>
// kernel: tpu_custom_call.1
$region0: #{tpu_custom_call.1}
  #allocation0 [shape = 'u32[]', space=smem, size = 0x4, offset = 0x4, fixed_abs, tag = 'smem constant byte address 0x4 - core index']
  #allocation1 [shape = 'u32[72,128]{1,0:T(1,128)}', space=vmem, size = 0x9000, scoped, tag = 'internal scratch']
  %s0 = inlined_call_operand.vmem [shape: f32[8,32], index: 0, kind: input, shape index: {}]
  %s1 = inlined_call_operand.vmem [shape: bf16[32,128], index: 1, kind: input, shape index: {}]
  %s2 = inlined_call_operand.vmem [shape: f32[1,128], index: 2, kind: input, shape index: {}]
  %s3 = inlined_call_operand.vmem [shape: bf16[128,64], index: 3, kind: input, shape index: {}]
  %s4 = inlined_call_operand.vmem [shape: f32[1,64], index: 4, kind: input, shape index: {}]
  %s5 = inlined_call_operand.vmem [shape: bf16[64,32], index: 5, kind: input, shape index: {}]
  %s6 = inlined_call_operand.vmem [shape: f32[1,32], index: 6, kind: input, shape index: {}]
  %s7 = inlined_call_operand.vmem [shape: bf16[32,9], index: 7, kind: input, shape index: {}]
  %s8 = inlined_call_operand.vmem [shape: f32[1,9], index: 8, kind: input, shape index: {}]
  %s9 = inlined_call_operand.hbm [shape: f32[8,9], index: 9, kind: output, shape index: {}]
  %s10 = sld [smem:[#allocation0]]
  $region46: #{tpu_custom_call.1} parent=0
    _
  %s12 = ssub.s32 1, %s10
  %s13 = scalar_select 0, %s12, %s10
  $region1: #{tpu_custom_call.1} parent=0
    #allocation2 [shape = 'u8[4096]{0}', space=vmem, size = 0x1000, scoped, tag = 'output window, operand 0, single buffered']
    #allocation3 [shape = 's32[1]{0}', space=sflag, size = 0x4, scoped, tag = 'scoped memory for tpu_custom_call.1']
    %14 = vsyncpa [#allocation3], 0
    // Predicated region
    $region2: #{tpu_custom_call.1} parent=1 // pred_check
      _
    $region3: #{tpu_custom_call.1} parent=1 // pred_check_branch
      %16 = sbr.rel (0) target = $region5
    $region4: #{tpu_custom_call.1} parent=1 // pred_region
      _
    $region5: #{tpu_custom_call.1} parent=1 // pred_fallthru
      _
    // Predicated region
    $region6: #{tpu_custom_call.1} parent=1 // pred_check
      _
    $region7: #{tpu_custom_call.1} parent=1 // pred_check_branch
      %18 = sbr.rel (0) target = $region9
    $region8: #{tpu_custom_call.1} parent=1 // pred_region
      _
    $region9: #{tpu_custom_call.1} parent=1 // pred_fallthru
      _
    // Predicated region
    $region10: #{tpu_custom_call.1} parent=1 // pred_check
      _
    $region11: #{tpu_custom_call.1} parent=1 // pred_check_branch
      %20 = sbr.rel (0) target = $region13
    $region12: #{tpu_custom_call.1} parent=1 // pred_region
      _
    $region13: #{tpu_custom_call.1} parent=1 // pred_fallthru
      _
    // Predicated region
    $region14: #{tpu_custom_call.1} parent=1 // pred_check
      _
    $region15: #{tpu_custom_call.1} parent=1 // pred_check_branch
      %22 = sbr.rel (0) target = $region17
    $region16: #{tpu_custom_call.1} parent=1 // pred_region
      _
    $region17: #{tpu_custom_call.1} parent=1 // pred_fallthru
      _
    // Predicated region
    $region18: #{tpu_custom_call.1} parent=1 // pred_check
      _
    $region19: #{tpu_custom_call.1} parent=1 // pred_check_branch
      %24 = sbr.rel (0) target = $region21
    $region20: #{tpu_custom_call.1} parent=1 // pred_region
      _
    $region21: #{tpu_custom_call.1} parent=1 // pred_fallthru
      _
    // Predicated region
    $region22: #{tpu_custom_call.1} parent=1 // pred_check
      _
    $region23: #{tpu_custom_call.1} parent=1 // pred_check_branch
      %26 = sbr.rel (0) target = $region25
    $region24: #{tpu_custom_call.1} parent=1 // pred_region
      _
    $region25: #{tpu_custom_call.1} parent=1 // pred_fallthru
      _
    // Predicated region
    $region26: #{tpu_custom_call.1} parent=1 // pred_check
      _
    $region27: #{tpu_custom_call.1} parent=1 // pred_check_branch
      %28 = sbr.rel (0) target = $region29
    $region28: #{tpu_custom_call.1} parent=1 // pred_region
      _
    $region29: #{tpu_custom_call.1} parent=1 // pred_fallthru
      _
    // Predicated region
    $region30: #{tpu_custom_call.1} parent=1 // pred_check
      _
    $region31: #{tpu_custom_call.1} parent=1 // pred_check_branch
      %30 = sbr.rel (0) target = $region33
    $region32: #{tpu_custom_call.1} parent=1 // pred_region
      _
    $region33: #{tpu_custom_call.1} parent=1 // pred_fallthru
      _
    // Predicated region
    $region34: #{tpu_custom_call.1} parent=1 // pred_check
      _
    $region35: #{tpu_custom_call.1} parent=1 // pred_check_branch
      %32 = sbr.rel (0) target = $region37
    $region36: #{tpu_custom_call.1} parent=1 // pred_region
      _
    $region37: #{tpu_custom_call.1} parent=1 // pred_fallthru
      _
    %v34 = vld [vmem:[%s0] sm:$0xff]
    %v35 = vpack.c.bf16 %v34, %v34
    %v36 = vld [vmem:[%s1] sm:$0xf]
    %v37 = vld [vmem:[%s1 + $0x4] sm:$0xf]
    %v38 = vld [vmem:[%s1 + $0x8] sm:$0xf]
    %v39 = vld [vmem:[%s1 + $0xc] sm:$0xf]
    %v40 = vld [vmem:[%s2] sm:$0x1]
    %v42 = vperm.slane %v40, 0
    %v48 = vunpack.c.l.b16 %v36
    %v49 = vunpack.c.l.b16 %v37
    %v50 = vunpack.c.l.b16 %v38
    %v51 = vunpack.c.l.b16 %v39
    %v52 = vpack.c.b16 %v49, %v48
    %v53 = vpack.c.b16 %v51, %v50
    %vm56 = vcmask 261120
    %v58 = vsel %vm56, %v35, 0
    %60 = vmatpush.bf16.msra.mxu0 0
    %61 = vmatpush.bf16.msra.mxu0 0
    %62 = vmatpush.bf16.msra.mxu0 0
    %63 = vmatpush.bf16.msra.mxu0 0
    %64 = vmatpush.bf16.msra.mxu0 0
    %65 = vmatpush.bf16.msra.mxu0 0
    %66 = vmatpush.bf16.msra.mxu0 %v53
    %67 = vmatpush.bf16.msra.mxu0 %v52
    %68 = vmatmul.bf16.gmra.mxu0 %v58
    %v69 = vpop.f32.mrf.mxu0
    %v70 = vadd.f32 %v42, %v69
    %v71 = vpop.f32.mrf.mxu0
    %72 = vdwg.mxu0
    %v73 = vmax.f32 %v70, 0.0
    %v74 = vpack.c.bf16 %v73, %v73
    %v75 = vld [vmem:[%s3] sm:$0xf]
    %v76 = vld [vmem:[%s3 + $0x4] sm:$0xf]
    %v77 = vld [vmem:[%s3 + $0x8] sm:$0xf]
    %v78 = vld [vmem:[%s3 + $0xc] sm:$0xf]
    %v79 = vld [vmem:[%s3 + $0x10] sm:$0xf]
    %v80 = vld [vmem:[%s3 + $0x14] sm:$0xf]
    %v81 = vld [vmem:[%s3 + $0x18] sm:$0xf]
    %v82 = vld [vmem:[%s3 + $0x1c] sm:$0xf]
    %v83 = vld [vmem:[%s3 + $0x20] sm:$0xf]
    %v84 = vld [vmem:[%s3 + $0x24] sm:$0xf]
    %v85 = vld [vmem:[%s3 + $0x28] sm:$0xf]
    %v86 = vld [vmem:[%s3 + $0x2c] sm:$0xf]
    %v87 = vld [vmem:[%s3 + $0x30] sm:$0xf]
    %v88 = vld [vmem:[%s3 + $0x34] sm:$0xf]
    %v89 = vld [vmem:[%s3 + $0x38] sm:$0xf]
    %v90 = vld [vmem:[%s3 + $0x3c] sm:$0xf]
    %v91 = vld [vmem:[%s4] sm:$0x1]
    %v93 = vperm.slane %v91, 0
    %v111 = vunpack.c.l.b16 %v75
    %v112 = vunpack.c.l.b16 %v76
    %v113 = vunpack.c.l.b16 %v77
    %v114 = vunpack.c.l.b16 %v78
    %v115 = vunpack.c.l.b16 %v79
    %v116 = vunpack.c.l.b16 %v80
    %v117 = vunpack.c.l.b16 %v81
    %v118 = vunpack.c.l.b16 %v82
    %v119 = vunpack.c.l.b16 %v83
    %v120 = vunpack.c.l.b16 %v84
    %v121 = vunpack.c.l.b16 %v85
    %v122 = vunpack.c.l.b16 %v86
    %v123 = vunpack.c.l.b16 %v87
    %v124 = vunpack.c.l.b16 %v88
    %v125 = vunpack.c.l.b16 %v89
    %v126 = vunpack.c.l.b16 %v90
    %v127 = vpack.c.b16 %v112, %v111
    %v128 = vpack.c.b16 %v114, %v113
    %v129 = vpack.c.b16 %v116, %v115
    %v130 = vpack.c.b16 %v118, %v117
    %v131 = vpack.c.b16 %v120, %v119
    %v132 = vpack.c.b16 %v122, %v121
    %v133 = vpack.c.b16 %v124, %v123
    %v134 = vpack.c.b16 %v126, %v125
    %143 = vmatpush.bf16.msra.mxu0 %v134
    %144 = vmatpush.bf16.msra.mxu0 %v133
    %145 = vmatpush.bf16.msra.mxu0 %v132
    %146 = vmatpush.bf16.msra.mxu0 %v131
    %147 = vmatpush.bf16.msra.mxu0 %v130
    %148 = vmatpush.bf16.msra.mxu0 %v129
    %149 = vmatpush.bf16.msra.mxu0 %v128
    %150 = vmatpush.bf16.msra.mxu0 %v127
    %151 = vmatmul.bf16.gmra.mxu0 %v74
    %v152 = vpop.f32.mrf.mxu0
    %v153 = vadd.f32 %v93, %v152
    %v154 = vpop.f32.mrf.mxu0
    %155 = vdwg.mxu0
    %v156 = vmax.f32 %v153, 0.0
    %v157 = vpack.c.bf16 %v156, %v156
    %v158 = vld [vmem:[%s5] sm:$0xf]
    %v159 = vld [vmem:[%s5 + $0x4] sm:$0xf]
    %v160 = vld [vmem:[%s5 + $0x8] sm:$0xf]
    %v161 = vld [vmem:[%s5 + $0xc] sm:$0xf]
    %v162 = vld [vmem:[%s5 + $0x10] sm:$0xf]
    %v163 = vld [vmem:[%s5 + $0x14] sm:$0xf]
    %v164 = vld [vmem:[%s5 + $0x18] sm:$0xf]
    %v165 = vld [vmem:[%s5 + $0x1c] sm:$0xf]
    %v166 = vld [vmem:[%s6] sm:$0x1]
    %v168 = vperm.slane %v166, 0
    %v178 = vunpack.c.l.b16 %v158
    %v179 = vunpack.c.l.b16 %v159
    %v180 = vunpack.c.l.b16 %v160
    %v181 = vunpack.c.l.b16 %v161
    %v182 = vunpack.c.l.b16 %v162
    %v183 = vunpack.c.l.b16 %v163
    %v184 = vunpack.c.l.b16 %v164
    %v185 = vunpack.c.l.b16 %v165
    %v186 = vpack.c.b16 %v179, %v178
    %v187 = vpack.c.b16 %v181, %v180
    %v188 = vpack.c.b16 %v183, %v182
    %v189 = vpack.c.b16 %v185, %v184
    %vm194 = vcmask 523264
    %v196 = vsel %vm194, %v157, 0
    %198 = vmatpush.bf16.msra.mxu0 0
    %199 = vmatpush.bf16.msra.mxu0 0
    %200 = vmatpush.bf16.msra.mxu0 0
    %201 = vmatpush.bf16.msra.mxu0 0
    %202 = vmatpush.bf16.msra.mxu0 %v189
    %203 = vmatpush.bf16.msra.mxu0 %v188
    %204 = vmatpush.bf16.msra.mxu0 %v187
    %205 = vmatpush.bf16.msra.mxu0 %v186
    %206 = vmatmul.bf16.gmra.mxu0 %v196
    %v207 = vpop.f32.mrf.mxu0
    %v208 = vadd.f32 %v168, %v207
    %v209 = vpop.f32.mrf.mxu0
    %210 = vdwg.mxu0
    %v211 = vmax.f32 %v208, 0.0
    %v212 = vpack.c.bf16 %v211, %v211
    %v213 = vld [vmem:[%s7] sm:$0xf]
    %v214 = vld [vmem:[%s7 + $0x4] sm:$0xf]
    %v215 = vld [vmem:[%s7 + $0x8] sm:$0xf]
    %v216 = vld [vmem:[%s7 + $0xc] sm:$0xf]
    %v217 = vld [vmem:[%s8] sm:$0x1]
    %v219 = vperm.slane %v217, 0
    %v225 = vunpack.c.l.b16 %v213
    %v226 = vunpack.c.l.b16 %v214
    %v227 = vunpack.c.l.b16 %v215
    %v228 = vunpack.c.l.b16 %v216
    %v229 = vpack.c.b16 %v226, %v225
    %v230 = vpack.c.b16 %v228, %v227
    %v234 = vsel %vm56, %v212, 0
    %236 = vmatpush.bf16.msra.mxu0 0
    %237 = vmatpush.bf16.msra.mxu0 0
    %238 = vmatpush.bf16.msra.mxu0 0
    %239 = vmatpush.bf16.msra.mxu0 0
    %240 = vmatpush.bf16.msra.mxu0 0
    %241 = vmatpush.bf16.msra.mxu0 0
    %242 = vmatpush.bf16.msra.mxu0 %v230
    %243 = vmatpush.bf16.msra.mxu0 %v229
    %244 = vmatmul.bf16.gmra.mxu0 %v234
    %v245 = vpop.f32.mrf.mxu0
    %v246 = vadd.f32 %v219, %v245
    %v247 = vpop.f32.mrf.mxu0
    %248 = vdwg.mxu0
    %vm249 = vcmask 72704
    %250 = vst.msk [vmem:[#allocation2] sm:$0xff] %vm249, %v246
    // Predicated region
    $region38: #{tpu_custom_call.1} parent=1 // pred_check
      _
    $region39: #{tpu_custom_call.1} parent=1 // pred_check_branch
      %252 = sbr.rel (0) target = $region41
    $region40: #{tpu_custom_call.1} parent=1 // pred_region
      %254 = vsyncadd [#allocation3], 0
      %s256 = sshll.u32 [#allocation2], 4
      %s257 = int_to_ptr.vmem [resolvable:$true] %s256
      %s258 = sshll.u32 %s9, 4
      %s259 = int_to_ptr.hbm [resolvable:$true] %s258
      %261 = dma.vmem_to_hbm [thread:$0]  %s257, 128, %s259, [#allocation3]
    $region41: #{tpu_custom_call.1} parent=1 // pred_fallthru
      _
    // Predicated region
    $region42: #{tpu_custom_call.1} parent=1 // pred_check
      _
    $region43: #{tpu_custom_call.1} parent=1 // pred_check_branch
      %263 = sbr.rel (0) target = $region45
    $region44: #{tpu_custom_call.1} parent=1 // pred_region
      %265 = dma.done [#allocation3], 128
    $region45: #{tpu_custom_call.1} parent=1 // pred_fallthru
      _
    %266 = vsyncpa [#allocation3], 1

</llo_original>
